<compile_context>
chip_gen: v6e
topology: v6e:2x2x1
jax: 0.10.0
libtpu: 0.0.40
codegen_flags: <defaults>
</compile_context>

<pallas_src>
from functools import partial

import jax
import jax.numpy as jnp
from jax import lax
from jax.experimental import pallas as pl
from jax.experimental.pallas import tpu as pltpu


def _round_up(x, m):
    return (x + m - 1) // m * m


def _matmul_bn_relu_kernel(a_ref, w_ref, scale_ref, shift_ref, o_ref):
    # a_ref:     (tm, Kp)  bf16 im2col rows (built in the wrapper)
    # w_ref:     (Kp, Np)  bf16 (block-diagonal grouped) conv weights, VMEM-resident
    # scale_ref: (1,  Np)  f32  gamma / sqrt(running_var + eps), per output lane
    # shift_ref: (1,  Np)  f32  beta + scale * (conv_bias - running_mean), per output lane
    # o_ref:     (tm, Np)  f32  lane-dense output tile
    acc = jnp.dot(a_ref[...], w_ref[...], preferred_element_type=jnp.float32)
    y = acc * scale_ref[...] + shift_ref[...]
    o_ref[...] = jnp.maximum(y, 0.0).astype(o_ref.dtype)


@partial(jax.jit, static_argnames=("eps", "compute_dtype"))
def block_forward(x_nchw, weight, bias, gamma, beta,
                  running_mean, running_var, eps=1e-5,
                  compute_dtype=jnp.bfloat16):
    """Forward of Block in eval mode.  x_nchw: (N, Cin, H, W) float32."""
    N, Cin, H, W = x_nchw.shape
    Cout = weight.shape[0]
    K = 9 * Cin
    M = N * H * W

    # Output-lane grouping: pack g spatial positions per 128-lane output row when possible.
    if Cout % 128 == 0:
        g = 1                      # already lane-dense
    elif 128 % Cout == 0:
        g = 128 // Cout            # e.g. Cout=8 -> g=16, zero output padding
    else:
        g = 1                      # fall back to padded Cout lanes
    Kp = g * K
    Np = _round_up(g * Cout, 128)

    # ---- wrapper-side im2col (fuses under jit; ~9x input bytes, negligible at small Cin) ----
    x_nhwc = jnp.transpose(x_nchw, (0, 2, 3, 1))                       # (N,H,W,Cin)
    x_pad = jnp.pad(x_nhwc, ((0, 0), (1, 1), (1, 1), (0, 0))).astype(compute_dtype)
    cols = [x_pad[:, dy:dy + H, dx:dx + W, :] for dy in range(3) for dx in range(3)]
    a = jnp.concatenate(cols, axis=-1).reshape(M, K)                   # (M, 9*Cin) bf16

    M_g = _round_up(M, g)
    if M_g != M:
        a = jnp.pad(a, ((0, M_g - M), (0, 0)))
    Mp = M_g // g
    a = a.reshape(Mp, Kp)                                              # group g rows -> lanes

    # ---- row tiling: big tiles to amortize grid-step overhead, capped by VMEM ----
    tm_vmem = max(8, ((4 << 20) // (Kp * 2)) // 8 * 8)                 # LHS tile <= ~4 MiB
    tm = min(512, tm_vmem, _round_up(Mp, 8))
    Mp_pad = _round_up(Mp, tm)
    if Mp_pad != Mp:
        a = jnp.pad(a, ((0, Mp_pad - Mp), (0, 0)))

    # ---- weights: PyTorch (Cout,Cin,kh,kw) -> (kh,kw,Cin,Cout) -> block-diagonal (Kp,Np) ----
    w_k = jnp.transpose(weight, (2, 3, 1, 0)).reshape(K, Cout).astype(jnp.float32)
    w_bd = jnp.kron(jnp.eye(g, dtype=jnp.float32), w_k)               # (Kp, g*Cout)
    w_bd = jnp.pad(w_bd, ((0, 0), (0, Np - g * Cout))).astype(compute_dtype)

    # ---- fold conv bias into the BatchNorm affine: y = scale*conv + shift ----
    scale = (gamma / jnp.sqrt(running_var + eps)).astype(jnp.float32)
    shift = (beta + scale * (bias - running_mean)).astype(jnp.float32)
    scale_p = jnp.pad(jnp.tile(scale, g), (0, Np - g * Cout)).reshape(1, Np)
    shift_p = jnp.pad(jnp.tile(shift, g), (0, Np - g * Cout)).reshape(1, Np)

    # ---- explicit VMEM budget (double-buffered streams + resident weights) ----
    est = (2 * tm * Kp * 2 + 2 * Kp * Np * 2 + 2 * tm * Np * 4 + 4 * Np * 4) * 2 + (1 << 20)
    vmem_limit = int(min(64 << 20, max(est, 16 << 20)))

    out_slab = pl.pallas_call(
        _matmul_bn_relu_kernel,
        out_shape=jax.ShapeDtypeStruct((Mp_pad, Np), jnp.float32),
        grid_spec=pltpu.PrefetchScalarGridSpec(
            num_scalar_prefetch=0,
            grid=(Mp_pad // tm,),
            in_specs=[
                pl.BlockSpec((tm, Kp), lambda i: (i, 0)),
                pl.BlockSpec((Kp, Np), lambda i: (0, 0)),   # resident across steps
                pl.BlockSpec((1, Np), lambda i: (0, 0)),    # resident
                pl.BlockSpec((1, Np), lambda i: (0, 0)),    # resident
            ],
            out_specs=pl.BlockSpec((tm, Np), lambda i: (i, 0)),
        ),
        compiler_params=pltpu.CompilerParams(
            dimension_semantics=("parallel",),
            vmem_limit_bytes=vmem_limit),
    )(a, w_bd, scale_p, shift_p)

    # ---- ungroup / unpad, restore NCHW (fuses under jit) ----
    if g > 1:
        out_flat = out_slab.reshape(-1, Cout)[:M]          # Np == g*Cout exactly
    else:
        out_flat = out_slab[:M, :Cout]
    out = out_flat.reshape(N, H, W, Cout)
    return jnp.transpose(out, (0, 3, 1, 2)).astype(x_nchw.dtype)


def _reference_forward(x_nchw, weight, bias, gamma, beta,
                       running_mean, running_var, eps=1e-5, conv_dtype=None):
    """Plain-JAX reference (eval-mode Block).  If conv_dtype is given, the conv
    operands are cast to it (matching the kernel's bf16 MXU operands)."""
    xx, ww = x_nchw, weight
    if conv_dtype is not None:
        xx, ww = xx.astype(conv_dtype), ww.astype(conv_dtype)
    y = lax.conv_general_dilated(
        xx, ww, window_strides=(1, 1), padding=((1, 1), (1, 1)),
        dimension_numbers=("NCHW", "OIHW", "NCHW"),
        preferred_element_type=jnp.float32)
    y = y + bias[None, :, None, None]
    scale = gamma / jnp.sqrt(running_var + eps)
    shift = beta - running_mean * scale
    y = y * scale[None, :, None, None] + shift[None, :, None, None]
    return jnp.maximum(y, 0.0)


if __name__ == "__main__":
    # Small shapes consistent with the module's forward: NCHW input.
    N, Cin, H, W = 2, 4, 16, 16
    Cout = 8
    dropout_p = 0.1  # unused in eval mode

    key = jax.random.PRNGKey(0)
    kx, kw, kb, kg, kbe = jax.random.split(key, 5)

    x = jax.random.normal(kx, (N, Cin, H, W), dtype=jnp.float32)

    # Deterministic parameter init (synthetic, shapes match nn.Conv2d / nn.BatchNorm2d).
    fan_in = Cin * 3 * 3
    bound = 1.0 / (fan_in ** 0.5)
    weight = jax.random.uniform(kw, (Cout, Cin, 3, 3), jnp.float32, -bound, bound)
    bias = jax.random.uniform(kb, (Cout,), jnp.float32, -bound, bound)
    gamma = 1.0 + 0.1 * jax.random.normal(kg, (Cout,), jnp.float32)
    beta = 0.1 * jax.random.normal(kbe, (Cout,), jnp.float32)
    running_mean = jnp.zeros((Cout,), jnp.float32)
    running_var = jnp.ones((Cout,), jnp.float32)

    out = block_forward(x, weight, bias, gamma, beta, running_mean, running_var)
    out = jax.block_until_ready(out)
    assert out.shape == (N, Cout, H, W), out.shape

    # Matched-precision reference (bf16 conv operands, f32 accumulation) -> tight check.
    ref_matched = _reference_forward(x, weight, bias, gamma, beta,
                                     running_mean, running_var,
                                     conv_dtype=jnp.bfloat16)
    ref_matched = jax.block_until_ready(ref_matched)
    err_matched = float(jnp.max(jnp.abs(out - ref_matched)))
    assert err_matched < 5e-3, err_matched

    # Full-precision reference -> loose check (bf16 operand rounding only).
    ref_f32 = _reference_forward(x, weight, bias, gamma, beta,
                                 running_mean, running_var)
    ref_f32 = jax.block_until_ready(ref_f32)
    err_full = float(jnp.max(jnp.abs(out - ref_f32)))
    assert err_full < 5e-2, err_full

    print("KERNEL_OK")
</pallas_src>

<mosaic_0001>
module attributes {stable_mosaic.version = 11 : i64} {
  func.func @_matmul_bn_relu_kernel(%arg0: i32, %arg1: memref<32x576xbf16, #tpu.memory_space<vmem>>, %arg2: memref<576x128xbf16, #tpu.memory_space<vmem>>, %arg3: memref<1x128xf32, #tpu.memory_space<vmem>>, %arg4: memref<1x128xf32, #tpu.memory_space<vmem>>, %arg5: memref<32x128xf32, #tpu.memory_space<vmem>>) attributes {dimension_semantics = [#tpu.dimension_semantics<parallel>], iteration_bounds = array<i64: 1>, scalar_prefetch = 0 : i64, scratch_operands = 0 : i64, tpu.core_type = #tpu.core_type<tc>, window_params = [{transform_indices = @transform_0, window_bounds = array<i64: 32, 576>}, {pipeline_mode = #tpu.pipeline_mode<synchronous>, transform_indices = @transform_1, window_bounds = array<i64: 576, 128>}, {pipeline_mode = #tpu.pipeline_mode<synchronous>, transform_indices = @transform_2, window_bounds = array<i64: 1, 128>}, {pipeline_mode = #tpu.pipeline_mode<synchronous>, transform_indices = @transform_3, window_bounds = array<i64: 1, 128>}, {transform_indices = @transform_4, window_bounds = array<i64: 32, 128>}]} {
    %c0 = arith.constant 0 : index
    %c0_0 = arith.constant 0 : index
    %0 = vector.load %arg1[%c0, %c0_0] : memref<32x576xbf16, #tpu.memory_space<vmem>>, vector<32x576xbf16>
    %c0_1 = arith.constant 0 : index
    %c0_2 = arith.constant 0 : index
    %1 = vector.load %arg2[%c0_1, %c0_2] : memref<576x128xbf16, #tpu.memory_space<vmem>>, vector<576x128xbf16>
    %cst = arith.constant dense<0.000000e+00> : vector<32x128xf32>
    %2 = tpu.matmul %0, %1, %cst {dimension_numbers = #tpu.dot_dimension_numbers<[1], [0], [0], [1], [0, 0, 1, 1], [], []>} : vector<32x576xbf16>, vector<576x128xbf16>, vector<32x128xf32> -> vector<32x128xf32>
    %c0_3 = arith.constant 0 : index
    %c0_4 = arith.constant 0 : index
    %3 = vector.load %arg3[%c0_3, %c0_4] : memref<1x128xf32, #tpu.memory_space<vmem>>, vector<1x128xf32>
    %4 = vector.broadcast %3 : vector<1x128xf32> to vector<32x128xf32>
    %5 = arith.mulf %2, %4 : vector<32x128xf32>
    %c0_5 = arith.constant 0 : index
    %c0_6 = arith.constant 0 : index
    %6 = vector.load %arg4[%c0_5, %c0_6] : memref<1x128xf32, #tpu.memory_space<vmem>>, vector<1x128xf32>
    %7 = vector.broadcast %6 : vector<1x128xf32> to vector<32x128xf32>
    %8 = arith.addf %5, %7 : vector<32x128xf32>
    %cst_7 = arith.constant 0.000000e+00 : f32
    %9 = vector.broadcast %cst_7 : f32 to vector<32x128xf32>
    %10 = arith.maximumf %8, %9 : vector<32x128xf32>
    %c0_8 = arith.constant 0 : index
    %c0_9 = arith.constant 0 : index
    %11 = vector.load %arg5[%c0_8, %c0_9] : memref<32x128xf32, #tpu.memory_space<vmem>>, vector<32x128xf32>
    tpu.vector_store %arg5[%c0_8, %c0_9], %10 {strides = array<i32>} : memref<32x128xf32, #tpu.memory_space<vmem>>, vector<32x128xf32>,
    return
  }
  func.func @transform_0(%arg0: i32) -> (i32, i32) {
    %c0_i32 = arith.constant 0 : i32
    %c0_i32_0 = arith.constant 0 : i32
    return %arg0, %c0_i32 : i32, i32
  }
  func.func @transform_1(%arg0: i32) -> (i32, i32) {
    %c0_i32 = arith.constant 0 : i32
    %c0_i32_0 = arith.constant 0 : i32
    %c0_i32_1 = arith.constant 0 : i32
    return %c0_i32, %c0_i32_0 : i32, i32
  }
  func.func @transform_2(%arg0: i32) -> (i32, i32) {
    %c0_i32 = arith.constant 0 : i32
    %c0_i32_0 = arith.constant 0 : i32
    %c0_i32_1 = arith.constant 0 : i32
    return %c0_i32, %c0_i32_0 : i32, i32
  }
  func.func @transform_3(%arg0: i32) -> (i32, i32) {
    %c0_i32 = arith.constant 0 : i32
    %c0_i32_0 = arith.constant 0 : i32
    %c0_i32_1 = arith.constant 0 : i32
    return %c0_i32, %c0_i32_0 : i32, i32
  }
  func.func @transform_4(%arg0: i32) -> (i32, i32) {
    %c0_i32 = arith.constant 0 : i32
    %c0_i32_0 = arith.constant 0 : i32
    return %arg0, %c0_i32 : i32, i32
  }
}

</mosaic_0001>

<llo_original>
// kernel: tile.18
$region0: #{tile.18}
  #allocation0 [shape = 's32[1]{0}', space=sflag, size = 0x4, scoped, tag = 'scoped memory for tile.18']
  %s0 = inlined_call_operand.vmem [shape: f32[8], index: 0, kind: input, shape index: {}]
  %s1 = inlined_call_operand.vmem [shape: f32[16,8], index: 1, kind: output, shape index: {}]
  // Predicated region
  $region2: #{tile.18} parent=0 // pred_check
    _
  $region3: #{tile.18} parent=0 // pred_check_branch
    %3 = sbr.rel (0) target = $region5
  $region4: #{tile.18} parent=0 // pred_region
    _
  $region5: #{tile.18} parent=0 // pred_fallthru
    _
  %v4 = vld [vmem:[%s0] ss:$0 sm:$0xff]
  %5 = vst [vmem:[%s1] sm:$0xff] %v4
  %s6 = scalar_lea.vmem %s1, 8
  %7 = vst [vmem:[%s6] sm:$0xff] %v4

// kernel: mul.4
$region0: #{mul.4}
  %s0 = inlined_call_operand.vmem [shape: f32[3,3,4,8], index: 0, kind: input, shape index: {}]
  %s1 = inlined_call_operand.vmem [shape: f32[36,8], index: 1, kind: output, shape index: {}]
  $region1: #{mul.4} parent=0
    #allocation0 [shape = 'u8[36864]{0}', space=vmem, size = 0x9000, scoped, tag = 'scoped mem for input reshape']
    %s3 = sshll.u32 1, 4
    %s4 = ssub.s32 %s3, 1
    %s5 = smul.addr 4, 8
    %s6 = scalar_lea.vmem %s0, %s5
    %v7 = vld [vmem:[%s6] sm:%s4]
    %s8 = scalar_lea.vmem [#allocation0], 64
    %9 = vst [vmem:[%s8] sm:%s4] %v7
    %s10 = smul.addr 4, 7
    %s11 = scalar_lea.vmem %s0, %s10
    %v12 = vld [vmem:[%s11] sm:%s4]
    %s13 = scalar_lea.vmem [#allocation0], 56
    %14 = vst [vmem:[%s13] sm:%s4] %v12
    %s15 = smul.addr 4, 6
    %s16 = scalar_lea.vmem %s0, %s15
    %v17 = vld [vmem:[%s16] sm:%s4]
    %s18 = scalar_lea.vmem [#allocation0], 48
    %19 = vst [vmem:[%s18] sm:%s4] %v17
    %s20 = smul.addr 4, 5
    %s21 = scalar_lea.vmem %s0, %s20
    %v22 = vld [vmem:[%s21] sm:%s4]
    %s23 = scalar_lea.vmem [#allocation0], 40
    %24 = vst [vmem:[%s23] sm:%s4] %v22
    %s25 = smul.addr 4, 4
    %s26 = scalar_lea.vmem %s0, %s25
    %v27 = vld [vmem:[%s26] sm:%s4]
    %s28 = scalar_lea.vmem [#allocation0], 32
    %29 = vst [vmem:[%s28] sm:%s4] %v27
    %s30 = smul.addr 4, 3
    %s31 = scalar_lea.vmem %s0, %s30
    %v32 = vld [vmem:[%s31] sm:%s4]
    %s33 = scalar_lea.vmem [#allocation0], 24
    %34 = vst [vmem:[%s33] sm:%s4] %v32
    %s35 = smul.addr 4, 2
    %s36 = scalar_lea.vmem %s0, %s35
    %v37 = vld [vmem:[%s36] sm:%s4]
    %s38 = scalar_lea.vmem [#allocation0], 16
    %39 = vst [vmem:[%s38] sm:%s4] %v37
    %s40 = scalar_lea.vmem %s0, 4
    %v41 = vld [vmem:[%s40] sm:%s4]
    %s42 = scalar_lea.vmem [#allocation0], 8
    %43 = vst [vmem:[%s42] sm:%s4] %v41
    %v44 = vld [vmem:[%s0] sm:%s4]
    %45 = vst [vmem:[#allocation0] sm:%s4] %v44
    %v46 = vld [vmem:[#allocation0] sm:$0xf]
    %vm47 = vcmask 64512
    %48 = vst.msk [vmem:[%s1] sm:$0xf] %vm47, %v46
    %s49 = scalar_lea.vmem [#allocation0], 8
    %v50 = vld [vmem:[%s49] sm:$0xf]
    %vm51 = vcmask 64512
    %s52 = scalar_lea.vmem %s1, 4
    %53 = vst.msk [vmem:[%s52] sm:$0xf] %vm51, %v50
    %s54 = scalar_lea.vmem [#allocation0], 16
    %v55 = vld [vmem:[%s54] sm:$0xf]
    %vm56 = vcmask 64512
    %s57 = scalar_lea.vmem %s1, 8
    %58 = vst.msk [vmem:[%s57] sm:$0xf] %vm56, %v55
    %s59 = scalar_lea.vmem [#allocation0], 24
    %v60 = vld [vmem:[%s59] sm:$0xf]
    %vm61 = vcmask 64512
    %s62 = scalar_lea.vmem %s1, 12
    %63 = vst.msk [vmem:[%s62] sm:$0xf] %vm61, %v60
    %s64 = scalar_lea.vmem [#allocation0], 32
    %v65 = vld [vmem:[%s64] sm:$0xf]
    %vm66 = vcmask 64512
    %s67 = scalar_lea.vmem %s1, 16
    %68 = vst.msk [vmem:[%s67] sm:$0xf] %vm66, %v65
    %s69 = scalar_lea.vmem [#allocation0], 40
    %v70 = vld [vmem:[%s69] sm:$0xf]
    %vm71 = vcmask 64512
    %s72 = scalar_lea.vmem %s1, 20
    %73 = vst.msk [vmem:[%s72] sm:$0xf] %vm71, %v70
    %s74 = scalar_lea.vmem [#allocation0], 48
    %v75 = vld [vmem:[%s74] sm:$0xf]
    %vm76 = vcmask 64512
    %s77 = scalar_lea.vmem %s1, 24
    %78 = vst.msk [vmem:[%s77] sm:$0xf] %vm76, %v75
    %s79 = scalar_lea.vmem [#allocation0], 56
    %v80 = vld [vmem:[%s79] sm:$0xf]
    %vm81 = vcmask 64512
    %s82 = scalar_lea.vmem %s1, 28
    %83 = vst.msk [vmem:[%s82] sm:$0xf] %vm81, %v80
    %s84 = scalar_lea.vmem [#allocation0], 64
    %v85 = vld [vmem:[%s84] sm:$0xf]
    %vm86 = vcmask 64512
    %s87 = scalar_lea.vmem %s1, 32
    %88 = vst.msk [vmem:[%s87] sm:$0xf] %vm86, %v85

// kernel: block_forward.1
$region0: #{block_forward.1}
  #allocation0 [shape = 'u32[]', space=smem, size = 0x4, offset = 0x4, fixed_abs, tag = 'smem constant byte address 0x4 - core index']
  #allocation1 [shape = 'u32[144,128]{1,0:T(1,128)}', space=vmem, size = 0x12000, scoped, tag = 'internal scratch']
  %s0 = inlined_call_operand.vmem [shape: bf16[32,576], index: 0, kind: input, shape index: {}]
  %s1 = inlined_call_operand.vmem [shape: bf16[576,128], index: 1, kind: input, shape index: {}]
  %s2 = inlined_call_operand.vmem [shape: f32[1,128], index: 2, kind: input, shape index: {}]
  %s3 = inlined_call_operand.vmem [shape: f32[1,128], index: 3, kind: input, shape index: {}]
  %s4 = inlined_call_operand.vmem [shape: f32[32,128], index: 4, kind: output, shape index: {}]
  %s5 = sld [smem:[#allocation0]]
  $region26: #{block_forward.1} parent=0
    _
  %s7 = ssub.s32 1, %s5
  %s8 = scalar_select 0, %s7, %s5
  // Predicated region
  $region2: #{block_forward.1} parent=0 // pred_check
    _
  $region3: #{block_forward.1} parent=0 // pred_check_branch
    %10 = sbr.rel (0) target = $region5
  $region4: #{block_forward.1} parent=0 // pred_region
    _
  $region5: #{block_forward.1} parent=0 // pred_fallthru
    _
  // Predicated region
  $region6: #{block_forward.1} parent=0 // pred_check
    _
  $region7: #{block_forward.1} parent=0 // pred_check_branch
    %12 = sbr.rel (0) target = $region9
  $region8: #{block_forward.1} parent=0 // pred_region
    _
  $region9: #{block_forward.1} parent=0 // pred_fallthru
    _
  // Predicated region
  $region10: #{block_forward.1} parent=0 // pred_check
    _
  $region11: #{block_forward.1} parent=0 // pred_check_branch
    %14 = sbr.rel (0) target = $region13
  $region12: #{block_forward.1} parent=0 // pred_region
    _
  $region13: #{block_forward.1} parent=0 // pred_fallthru
    _
  // Predicated region
  $region14: #{block_forward.1} parent=0 // pred_check
    _
  $region15: #{block_forward.1} parent=0 // pred_check_branch
    %16 = sbr.rel (0) target = $region17
  $region16: #{block_forward.1} parent=0 // pred_region
    _
  $region17: #{block_forward.1} parent=0 // pred_fallthru
    _
  %v18 = vld [vmem:[%s0] sm:$0xff]
  %v19 = vld [vmem:[%s0 + $0x8] sm:$0xff]
  %v20 = vld [vmem:[%s0 + $0x10] sm:$0xf]
  %v21 = vld [vmem:[%s0 + $0x14] sm:$0xff]
  %v22 = vld [vmem:[%s0 + $0x1c] sm:$0xff]
  %v23 = vld [vmem:[%s0 + $0x24] sm:$0xf]
  %v24 = vld [vmem:[%s0 + $0x28] sm:$0xff]
  %v25 = vld [vmem:[%s0 + $0x30] sm:$0xff]
  %v26 = vld [vmem:[%s0 + $0x38] sm:$0xf]
  %v27 = vld [vmem:[%s0 + $0x3c] sm:$0xff]
  %v28 = vld [vmem:[%s0 + $0x44] sm:$0xff]
  %v29 = vld [vmem:[%s0 + $0x4c] sm:$0xf]
  %v30 = vld [vmem:[%s1] sm:$0xf]
  %v31 = vld [vmem:[%s1 + $0x4] sm:$0xf]
  %v32 = vld [vmem:[%s1 + $0x8] sm:$0xf]
  %v33 = vld [vmem:[%s1 + $0xc] sm:$0xf]
  %v34 = vld [vmem:[%s1 + $0x10] sm:$0xf]
  %v35 = vld [vmem:[%s1 + $0x14] sm:$0xf]
  %v36 = vld [vmem:[%s1 + $0x18] sm:$0xf]
  %v37 = vld [vmem:[%s1 + $0x1c] sm:$0xf]
  %v38 = vld [vmem:[%s1 + $0x20] sm:$0xf]
  %v39 = vld [vmem:[%s1 + $0x24] sm:$0xf]
  %v40 = vld [vmem:[%s1 + $0x28] sm:$0xf]
  %v41 = vld [vmem:[%s1 + $0x2c] sm:$0xf]
  %v42 = vld [vmem:[%s1 + $0x30] sm:$0xf]
  %v43 = vld [vmem:[%s1 + $0x34] sm:$0xf]
  %v44 = vld [vmem:[%s1 + $0x38] sm:$0xf]
  %v45 = vld [vmem:[%s1 + $0x3c] sm:$0xf]
  %v46 = vld [vmem:[%s1 + $0x40] sm:$0xf]
  %v47 = vld [vmem:[%s1 + $0x44] sm:$0xf]
  %v48 = vld [vmem:[%s1 + $0x48] sm:$0xf]
  %v49 = vld [vmem:[%s1 + $0x4c] sm:$0xf]
  %v50 = vld [vmem:[%s1 + $0x50] sm:$0xf]
  %v51 = vld [vmem:[%s1 + $0x54] sm:$0xf]
  %v52 = vld [vmem:[%s1 + $0x58] sm:$0xf]
  %v53 = vld [vmem:[%s1 + $0x5c] sm:$0xf]
  %v54 = vld [vmem:[%s1 + $0x60] sm:$0xf]
  %v55 = vld [vmem:[%s1 + $0x64] sm:$0xf]
  %v56 = vld [vmem:[%s1 + $0x68] sm:$0xf]
  %v57 = vld [vmem:[%s1 + $0x6c] sm:$0xf]
  %v58 = vld [vmem:[%s1 + $0x70] sm:$0xf]
  %v59 = vld [vmem:[%s1 + $0x74] sm:$0xf]
  %v60 = vld [vmem:[%s1 + $0x78] sm:$0xf]
  %v61 = vld [vmem:[%s1 + $0x7c] sm:$0xf]
  %v62 = vld [vmem:[%s1 + $0x80] sm:$0xf]
  %v63 = vld [vmem:[%s1 + $0x84] sm:$0xf]
  %v64 = vld [vmem:[%s1 + $0x88] sm:$0xf]
  %v65 = vld [vmem:[%s1 + $0x8c] sm:$0xf]
  %v66 = vld [vmem:[%s1 + $0x90] sm:$0xf]
  %v67 = vld [vmem:[%s1 + $0x94] sm:$0xf]
  %v68 = vld [vmem:[%s1 + $0x98] sm:$0xf]
  %v69 = vld [vmem:[%s1 + $0x9c] sm:$0xf]
  %v70 = vld [vmem:[%s1 + $0xa0] sm:$0xf]
  %v71 = vld [vmem:[%s1 + $0xa4] sm:$0xf]
  %v72 = vld [vmem:[%s1 + $0xa8] sm:$0xf]
  %v73 = vld [vmem:[%s1 + $0xac] sm:$0xf]
  %v74 = vld [vmem:[%s1 + $0xb0] sm:$0xf]
  %v75 = vld [vmem:[%s1 + $0xb4] sm:$0xf]
  %v76 = vld [vmem:[%s1 + $0xb8] sm:$0xf]
  %v77 = vld [vmem:[%s1 + $0xbc] sm:$0xf]
  %v78 = vld [vmem:[%s1 + $0xc0] sm:$0xf]
  %v79 = vld [vmem:[%s1 + $0xc4] sm:$0xf]
  %v80 = vld [vmem:[%s1 + $0xc8] sm:$0xf]
  %v81 = vld [vmem:[%s1 + $0xcc] sm:$0xf]
  %v82 = vld [vmem:[%s1 + $0xd0] sm:$0xf]
  %v83 = vld [vmem:[%s1 + $0xd4] sm:$0xf]
  %v84 = vld [vmem:[%s1 + $0xd8] sm:$0xf]
  %v85 = vld [vmem:[%s1 + $0xdc] sm:$0xf]
  %v86 = vld [vmem:[%s1 + $0xe0] sm:$0xf]
  %v87 = vld [vmem:[%s1 + $0xe4] sm:$0xf]
  %v88 = vld [vmem:[%s1 + $0xe8] sm:$0xf]
  %v89 = vld [vmem:[%s1 + $0xec] sm:$0xf]
  %v90 = vld [vmem:[%s1 + $0xf0] sm:$0xf]
  %v91 = vld [vmem:[%s1 + $0xf4] sm:$0xf]
  %v92 = vld [vmem:[%s1 + $0xf8] sm:$0xf]
  %v93 = vld [vmem:[%s1 + $0xfc] sm:$0xf]
  %v94 = vld [vmem:[%s1 + $0x100] sm:$0xf]
  %v95 = vld [vmem:[%s1 + $0x104] sm:$0xf]
  %v96 = vld [vmem:[%s1 + $0x108] sm:$0xf]
  %v97 = vld [vmem:[%s1 + $0x10c] sm:$0xf]
  %v98 = vld [vmem:[%s1 + $0x110] sm:$0xf]
  %v99 = vld [vmem:[%s1 + $0x114] sm:$0xf]
  %v100 = vld [vmem:[%s1 + $0x118] sm:$0xf]
  %v101 = vld [vmem:[%s1 + $0x11c] sm:$0xf]
  %v114 = vunpack.c.l.b16 %v18
  %v115 = vunpack.c.h.b16 %v18
  %v116 = vunpack.c.l.b16 %v19
  %v117 = vunpack.c.h.b16 %v19
  %v118 = vunpack.c.l.b16 %v20
  %v119 = vunpack.c.l.b16 %v21
  %v120 = vunpack.c.h.b16 %v21
  %v121 = vunpack.c.l.b16 %v22
  %v122 = vunpack.c.h.b16 %v22
  %v123 = vunpack.c.l.b16 %v23
  %v124 = vunpack.c.l.b16 %v24
  %v125 = vunpack.c.h.b16 %v24
  %v126 = vunpack.c.l.b16 %v25
  %v127 = vunpack.c.h.b16 %v25
  %v128 = vunpack.c.l.b16 %v26
  %v129 = vunpack.c.l.b16 %v27
  %v130 = vunpack.c.h.b16 %v27
  %v131 = vunpack.c.l.b16 %v28
  %v132 = vunpack.c.h.b16 %v28
  %v133 = vunpack.c.l.b16 %v29
  %v134 = vpack.c.b16 %v119, %v114
  %v135 = vpack.c.b16 %v120, %v115
  %v136 = vpack.c.b16 %v121, %v116
  %v137 = vpack.c.b16 %v122, %v117
  %v138 = vpack.c.b16 %v123, %v118
  %v139 = vpack.c.b16 %v129, %v124
  %v140 = vpack.c.b16 %v130, %v125
  %v141 = vpack.c.b16 %v131, %v126
  %v142 = vpack.c.b16 %v132, %v127
  %v143 = vpack.c.b16 %v133, %v128
  %v224 = vunpack.c.l.b16 %v30
  %v225 = vunpack.c.l.b16 %v31
  %v226 = vunpack.c.l.b16 %v32
  %v227 = vunpack.c.l.b16 %v33
  %v228 = vunpack.c.l.b16 %v34
  %v229 = vunpack.c.l.b16 %v35
  %v230 = vunpack.c.l.b16 %v36
  %v231 = vunpack.c.l.b16 %v37
  %v232 = vunpack.c.l.b16 %v38
  %v233 = vunpack.c.l.b16 %v39
  %v234 = vunpack.c.l.b16 %v40
  %v235 = vunpack.c.l.b16 %v41
  %v236 = vunpack.c.l.b16 %v42
  %v237 = vunpack.c.l.b16 %v43
  %v238 = vunpack.c.l.b16 %v44
  %v239 = vunpack.c.l.b16 %v45
  %v240 = vunpack.c.l.b16 %v46
  %v241 = vunpack.c.l.b16 %v47
  %v242 = vunpack.c.l.b16 %v48
  %v243 = vunpack.c.l.b16 %v49
  %v244 = vunpack.c.l.b16 %v50
  %v245 = vunpack.c.l.b16 %v51
  %v246 = vunpack.c.l.b16 %v52
  %v247 = vunpack.c.l.b16 %v53
  %v248 = vunpack.c.l.b16 %v54
  %v249 = vunpack.c.l.b16 %v55
  %v250 = vunpack.c.l.b16 %v56
  %v251 = vunpack.c.l.b16 %v57
  %v252 = vunpack.c.l.b16 %v58
  %v253 = vunpack.c.l.b16 %v59
  %v254 = vunpack.c.l.b16 %v60
  %v255 = vunpack.c.l.b16 %v61
  %v256 = vunpack.c.l.b16 %v62
  %v257 = vunpack.c.l.b16 %v63
  %v258 = vunpack.c.l.b16 %v64
  %v259 = vunpack.c.l.b16 %v65
  %v260 = vunpack.c.l.b16 %v66
  %v261 = vunpack.c.l.b16 %v67
  %v262 = vunpack.c.l.b16 %v68
  %v263 = vunpack.c.l.b16 %v69
  %v264 = vunpack.c.l.b16 %v70
  %v265 = vunpack.c.l.b16 %v71
  %v266 = vunpack.c.l.b16 %v72
  %v267 = vunpack.c.l.b16 %v73
  %v268 = vunpack.c.l.b16 %v74
  %v269 = vunpack.c.l.b16 %v75
  %v270 = vunpack.c.l.b16 %v76
  %v271 = vunpack.c.l.b16 %v77
  %v272 = vunpack.c.l.b16 %v78
  %v273 = vunpack.c.l.b16 %v79
  %v274 = vunpack.c.l.b16 %v80
  %v275 = vunpack.c.l.b16 %v81
  %v276 = vunpack.c.l.b16 %v82
  %v277 = vunpack.c.l.b16 %v83
  %v278 = vunpack.c.l.b16 %v84
  %v279 = vunpack.c.l.b16 %v85
  %v280 = vunpack.c.l.b16 %v86
  %v281 = vunpack.c.l.b16 %v87
  %v282 = vunpack.c.l.b16 %v88
  %v283 = vunpack.c.l.b16 %v89
  %v284 = vunpack.c.l.b16 %v90
  %v285 = vunpack.c.l.b16 %v91
  %v286 = vunpack.c.l.b16 %v92
  %v287 = vunpack.c.l.b16 %v93
  %v288 = vunpack.c.l.b16 %v94
  %v289 = vunpack.c.l.b16 %v95
  %v290 = vunpack.c.l.b16 %v96
  %v291 = vunpack.c.l.b16 %v97
  %v292 = vunpack.c.l.b16 %v98
  %v293 = vunpack.c.l.b16 %v99
  %v294 = vunpack.c.l.b16 %v100
  %v295 = vunpack.c.l.b16 %v101
  %v296 = vpack.c.b16 %v225, %v224
  %v297 = vpack.c.b16 %v227, %v226
  %v298 = vpack.c.b16 %v229, %v228
  %v299 = vpack.c.b16 %v231, %v230
  %v300 = vpack.c.b16 %v233, %v232
  %v301 = vpack.c.b16 %v235, %v234
  %v302 = vpack.c.b16 %v237, %v236
  %v303 = vpack.c.b16 %v239, %v238
  %v304 = vpack.c.b16 %v241, %v240
  %v305 = vpack.c.b16 %v243, %v242
  %v306 = vpack.c.b16 %v245, %v244
  %v307 = vpack.c.b16 %v247, %v246
  %v308 = vpack.c.b16 %v249, %v248
  %v309 = vpack.c.b16 %v251, %v250
  %v310 = vpack.c.b16 %v253, %v252
  %v311 = vpack.c.b16 %v255, %v254
  %v312 = vpack.c.b16 %v257, %v256
  %v313 = vpack.c.b16 %v259, %v258
  %v314 = vpack.c.b16 %v261, %v260
  %v315 = vpack.c.b16 %v263, %v262
  %v316 = vpack.c.b16 %v265, %v264
  %v317 = vpack.c.b16 %v267, %v266
  %v318 = vpack.c.b16 %v269, %v268
  %v319 = vpack.c.b16 %v271, %v270
  %v320 = vpack.c.b16 %v273, %v272
  %v321 = vpack.c.b16 %v275, %v274
  %v322 = vpack.c.b16 %v277, %v276
  %v323 = vpack.c.b16 %v279, %v278
  %v324 = vpack.c.b16 %v281, %v280
  %v325 = vpack.c.b16 %v283, %v282
  %v326 = vpack.c.b16 %v285, %v284
  %v327 = vpack.c.b16 %v287, %v286
  %v328 = vpack.c.b16 %v289, %v288
  %v329 = vpack.c.b16 %v291, %v290
  %v330 = vpack.c.b16 %v293, %v292
  %v331 = vpack.c.b16 %v295, %v294
  %vm368 = vcmask 523264
  %v370 = vsel %vm368, %v138, 0
  %v373 = vsel %vm368, %v143, 0
  %375 = vmatprep.subr.bf16.mxu0 0
  %376 = vmatpush1.bf16.msra.mxu0 %v303
  %377 = vmatprep.subr.bf16.mxu0 0
  %378 = vmatpush1.bf16.msra.mxu0 %v302
  %379 = vmatprep.subr.bf16.mxu0 0
  %380 = vmatpush1.bf16.msra.mxu0 %v301
  %381 = vmatprep.subr.bf16.mxu0 0
  %382 = vmatpush1.bf16.msra.mxu0 %v300
  %383 = vmatprep.subr.bf16.mxu0 0
  %384 = vmatpush1.bf16.msra.mxu0 %v299
  %385 = vmatprep.subr.bf16.mxu0 0
  %386 = vmatpush1.bf16.msra.mxu0 %v298
  %387 = vmatprep.subr.bf16.mxu0 0
  %388 = vmatpush1.bf16.msra.mxu0 %v297
  %389 = vmatprep.subr.bf16.mxu0 0
  %390 = vmatpush1.bf16.msra.mxu0 %v296
  %391 = vmatprep.subr.bf16.mxu0 0
  %392 = vmatpush2.bf16.msra.mxu0 %v311
  %393 = vmatprep.subr.bf16.mxu0 0
  %394 = vmatpush2.bf16.msra.mxu0 %v310
  %395 = vmatprep.subr.bf16.mxu0 0
  %396 = vmatpush2.bf16.msra.mxu0 %v309
  %397 = vmatprep.subr.bf16.mxu0 0
  %398 = vmatpush2.bf16.msra.mxu0 %v308
  %399 = vmatprep.subr.bf16.mxu0 0
  %400 = vmatpush2.bf16.msra.mxu0 %v307
  %401 = vmatprep.subr.bf16.mxu0 0
  %402 = vmatpush2.bf16.msra.mxu0 %v306
  %403 = vmatprep.subr.bf16.mxu0 0
  %404 = vmatpush2.bf16.msra.mxu0 %v305
  %405 = vmatprep.subr.bf16.mxu0 0
  %406 = vmatpush2.bf16.msra.mxu0 %v304
  %407 = vmatprep.mubr.bf16.mxu0 %v135
  %408 = vmatmul.mubr.bf16.gmra.mxu0 %v134
  %v409 = vpop.f32.mrf.mxu0
  %v410 = vadd.f32 0.0, %v409
  %v411 = vpop.f32.mrf.mxu0
  %v412 = vpop.f32.mrf.mxu0
  %v413 = vadd.f32 0.0, %v412
  %v414 = vpop.f32.mrf.mxu0
  %415 = vmatprep.mubr.bf16.mxu0 %v140
  %416 = vmatmul.mubr.bf16.gmra.mxu0 %v139
  %v417 = vpop.f32.mrf.mxu0
  %v418 = vadd.f32 0.0, %v417
  %v419 = vpop.f32.mrf.mxu0
  %v420 = vpop.f32.mrf.mxu0
  %v421 = vadd.f32 0.0, %v420
  %v422 = vpop.f32.mrf.mxu0
  %423 = vdwg.mxu0
  %424 = vmatprep.subr.bf16.mxu0 0
  %425 = vmatpush1.bf16.msra.mxu0 %v319
  %426 = vmatprep.subr.bf16.mxu0 0
  %427 = vmatpush1.bf16.msra.mxu0 %v318
  %428 = vmatprep.subr.bf16.mxu0 0
  %429 = vmatpush1.bf16.msra.mxu0 %v317
  %430 = vmatprep.subr.bf16.mxu0 0
  %431 = vmatpush1.bf16.msra.mxu0 %v316
  %432 = vmatprep.subr.bf16.mxu0 0
  %433 = vmatpush1.bf16.msra.mxu0 %v315
  %434 = vmatprep.subr.bf16.mxu0 0
  %435 = vmatpush1.bf16.msra.mxu0 %v314
  %436 = vmatprep.subr.bf16.mxu0 0
  %437 = vmatpush1.bf16.msra.mxu0 %v313
  %438 = vmatprep.subr.bf16.mxu0 0
  %439 = vmatpush1.bf16.msra.mxu0 %v312
  %440 = vmatprep.subr.bf16.mxu0 0
  %441 = vmatpush2.bf16.msra.mxu0 %v327
  %442 = vmatprep.subr.bf16.mxu0 0
  %443 = vmatpush2.bf16.msra.mxu0 %v326
  %444 = vmatprep.subr.bf16.mxu0 0
  %445 = vmatpush2.bf16.msra.mxu0 %v325
  %446 = vmatprep.subr.bf16.mxu0 0
  %447 = vmatpush2.bf16.msra.mxu0 %v324
  %448 = vmatprep.subr.bf16.mxu0 0
  %449 = vmatpush2.bf16.msra.mxu0 %v323
  %450 = vmatprep.subr.bf16.mxu0 0
  %451 = vmatpush2.bf16.msra.mxu0 %v322
  %452 = vmatprep.subr.bf16.mxu0 0
  %453 = vmatpush2.bf16.msra.mxu0 %v321
  %454 = vmatprep.subr.bf16.mxu0 0
  %455 = vmatpush2.bf16.msra.mxu0 %v320
  %456 = vmatprep.mubr.bf16.mxu0 %v137
  %457 = vmatmul.mubr.bf16.gmra.mxu0 %v136
  %v458 = vpop.f32.mrf.mxu0
  %v459 = vadd.f32 %v410, %v458
  %v460 = vpop.f32.mrf.mxu0
  %v461 = vpop.f32.mrf.mxu0
  %v462 = vadd.f32 %v413, %v461
  %v463 = vpop.f32.mrf.mxu0
  %464 = vmatprep.mubr.bf16.mxu0 %v142
  %465 = vmatmul.mubr.bf16.gmra.mxu0 %v141
  %v466 = vpop.f32.mrf.mxu0
  %v467 = vadd.f32 %v418, %v466
  %v468 = vpop.f32.mrf.mxu0
  %v469 = vpop.f32.mrf.mxu0
  %v470 = vadd.f32 %v421, %v469
  %v471 = vpop.f32.mrf.mxu0
  %472 = vdwg.mxu0
  %473 = vmatprep.subr.bf16.mxu0 0
  %474 = vmatpush1.bf16.msra.mxu0 0
  %475 = vmatprep.subr.bf16.mxu0 0
  %476 = vmatpush1.bf16.msra.mxu0 0
  %477 = vmatprep.subr.bf16.mxu0 0
  %478 = vmatpush1.bf16.msra.mxu0 0
  %479 = vmatprep.subr.bf16.mxu0 0
  %480 = vmatpush1.bf16.msra.mxu0 0
  %481 = vmatprep.subr.bf16.mxu0 0
  %482 = vmatpush1.bf16.msra.mxu0 %v331
  %483 = vmatprep.subr.bf16.mxu0 0
  %484 = vmatpush1.bf16.msra.mxu0 %v330
  %485 = vmatprep.subr.bf16.mxu0 0
  %486 = vmatpush1.bf16.msra.mxu0 %v329
  %487 = vmatprep.subr.bf16.mxu0 0
  %488 = vmatpush1.bf16.msra.mxu0 %v328
  %489 = vmatprep.subr.bf16.mxu0 0
  %490 = vmatpush2.bf16.msra.mxu0 0
  %491 = vmatprep.subr.bf16.mxu0 0
  %492 = vmatpush2.bf16.msra.mxu0 0
  %493 = vmatprep.subr.bf16.mxu0 0
  %494 = vmatpush2.bf16.msra.mxu0 0
  %495 = vmatprep.subr.bf16.mxu0 0
  %496 = vmatpush2.bf16.msra.mxu0 0
  %497 = vmatprep.subr.bf16.mxu0 0
  %498 = vmatpush2.bf16.msra.mxu0 0
  %499 = vmatprep.subr.bf16.mxu0 0
  %500 = vmatpush2.bf16.msra.mxu0 0
  %501 = vmatprep.subr.bf16.mxu0 0
  %502 = vmatpush2.bf16.msra.mxu0 0
  %503 = vmatprep.subr.bf16.mxu0 0
  %504 = vmatpush2.bf16.msra.mxu0 0
  %505 = vmatprep.mubr.bf16.mxu0 0
  %506 = vmatmul.mubr.bf16.gmra.mxu0 %v370
  %v507 = vpop.f32.mrf.mxu0
  %v508 = vadd.f32 %v459, %v507
  %v509 = vpop.f32.mrf.mxu0
  %v510 = vpop.f32.mrf.mxu0
  %v511 = vadd.f32 %v462, %v510
  %v512 = vpop.f32.mrf.mxu0
  %513 = vmatprep.mubr.bf16.mxu0 0
  %514 = vmatmul.mubr.bf16.gmra.mxu0 %v373
  %v515 = vpop.f32.mrf.mxu0
  %v516 = vadd.f32 %v467, %v515
  %v517 = vpop.f32.mrf.mxu0
  %v518 = vpop.f32.mrf.mxu0
  %v519 = vadd.f32 %v470, %v518
  %v520 = vpop.f32.mrf.mxu0
  %521 = vdwg.mxu0
  %v522 = vld [vmem:[%s2] sm:$0x1]
  %v524 = vlaneseq
  %v525 = vshrl.u32 %v524, 7
  %v526 = vsub.s32 0, %v525
  %v527 = vrot.slane %v522, %v526
  %v529 = vmul.f32 %v508, %v527
  %v530 = vmul.f32 %v511, %v527
  %v531 = vmul.f32 %v516, %v527
  %v532 = vmul.f32 %v519, %v527
  %v533 = vld [vmem:[%s3] sm:$0x1]
  %v535 = vlaneseq
  %v536 = vshrl.u32 %v535, 7
  %v537 = vsub.s32 0, %v536
  %v538 = vrot.slane %v533, %v537
  %v540 = vadd.f32 %v529, %v538
  %v541 = vadd.f32 %v530, %v538
  %v542 = vadd.f32 %v531, %v538
  %v543 = vadd.f32 %v532, %v538
  %v544 = vmax.f32 %v540, 0.0
  %v545 = vmax.f32 %v541, 0.0
  %v546 = vmax.f32 %v542, 0.0
  %v547 = vmax.f32 %v543, 0.0
  %548 = vst [vmem:[%s4] sm:$0xff] %v544
  %549 = vst [vmem:[%s4 + $0x8] sm:$0xff] %v545
  %550 = vst [vmem:[%s4 + $0x10] sm:$0xff] %v546
  %551 = vst [vmem:[%s4 + $0x18] sm:$0xff] %v547
  // Predicated region
  $region18: #{block_forward.1} parent=0 // pred_check
    _
  $region19: #{block_forward.1} parent=0 // pred_check_branch
    %553 = sbr.rel (0) target = $region21
  $region20: #{block_forward.1} parent=0 // pred_region
    _
  $region21: #{block_forward.1} parent=0 // pred_fallthru
    _
  // Predicated region
  $region22: #{block_forward.1} parent=0 // pred_check
    _
  $region23: #{block_forward.1} parent=0 // pred_check_branch
    %555 = sbr.rel (0) target = $region25
  $region24: #{block_forward.1} parent=0 // pred_region
    _
  $region25: #{block_forward.1} parent=0 // pred_fallthru
    _

</llo_original>
